<compile_context>
chip_gen: v5e
topology: v5e:2x2
jax: 0.10.0
libtpu: 0.0.40
codegen_flags: <defaults>
</compile_context>

<pallas_src>
import jax
import jax.numpy as jnp
from jax.experimental import pallas as pl
from jax.experimental.pallas import tpu as pltpu


def sentiment_kernel(x_ref, score_ref, b_ref, out_ref):
    # x_ref:     (B_tile, T) int32   token ids of this batch tile (VMEM)
    # score_ref: (1, V)      float32 fused (emb @ w) / T           (VMEM)
    # b_ref:     (1, 1)      float32 Linear bias                   (SMEM)
    # out_ref:   (B_tile, 1) float32
    B_tile, T = x_ref.shape
    V = score_ref.shape[1]

    ids = x_ref[...]                                               # (B_tile, T)
    vocab = jax.lax.broadcasted_iota(jnp.int32, (B_tile, V), 1)    # (B_tile, V)

    # counts[b, v] = #occurrences of token v in bag b, accumulated as T
    # lane-parallel 2-D compares in int32 (no 3-D one-hot, no sublane reduce).
    counts = jnp.zeros((B_tile, V), dtype=jnp.int32)
    for t in range(T):  # T is small & static -> fully unrolled at trace time
        counts = counts + (ids[:, t:t + 1] == vocab).astype(jnp.int32)

    # Fused EmbeddingBag-mean + Linear:  logits = counts . score + b
    # (score already carries the 1/T mean scale and the Linear weight).
    weighted = counts.astype(jnp.float32) * score_ref[...]         # (B_tile, V)
    logits = jnp.sum(weighted, axis=-1, keepdims=True) + b_ref[0, 0]

    sig = jax.nn.sigmoid(logits)
    out_ref[...] = jnp.round(sig * 1e4) / 1e4                      # round to 4 decimals


def sentiment_forward(x, emb, w, b, *, b_tile=8):
    B, T = x.shape
    V, E = emb.shape
    assert B % b_tile == 0, "batch must be a multiple of the batch tile"

    # Wrapper-side algebraic fusion (plain XLA, outside the kernel):
    #   (counts @ emb / T) @ w  ==  counts @ ((emb @ w) / T)
    score = (emb @ w).reshape(1, V) / jnp.float32(T)               # (1, V)
    bias = b.reshape(1, 1).astype(jnp.float32)

    return pl.pallas_call(
        sentiment_kernel,
        out_shape=jax.ShapeDtypeStruct((B, 1), jnp.float32),
        grid=(B // b_tile,),
        in_specs=[
            pl.BlockSpec((b_tile, T), lambda i: (i, 0)),           # token ids tile
            pl.BlockSpec((1, V), lambda i: (0, 0)),                # fused score row
            pl.BlockSpec(memory_space=pltpu.MemorySpace.SMEM),     # bias scalar
        ],
        out_specs=pl.BlockSpec((b_tile, 1), lambda i: (i, 0)),
        compiler_params=pltpu.CompilerParams(
            dimension_semantics=("parallel",),                     # shard bags on v7x
        ),
    )(x, score, bias)


if __name__ == "__main__":
    key = jax.random.PRNGKey(0)
    k_emb, k_w, k_b, k_x = jax.random.split(key, 4)

    V, E = 128, 16   # vocabulary_size = 128, embedding dim = 16 (from the module)
    B, T = 64, 8     # 64 bags of 8 tokens each (batched to amortize launch/DMA)

    # Deterministic synthetic parameters (matching PyTorch init distributions):
    #   EmbeddingBag.weight ~ N(0, 1); Linear weight/bias ~ U(-1/sqrt(16), 1/sqrt(16))
    emb = jax.random.normal(k_emb, (V, E), dtype=jnp.float32)
    bound = 1.0 / jnp.sqrt(jnp.float32(E))
    w = jax.random.uniform(k_w, (E, 1), jnp.float32, -bound, bound)   # Linear weight^T
    b = jax.random.uniform(k_b, (1, 1), jnp.float32, -bound, bound)   # Linear bias

    x = jax.random.randint(k_x, (B, T), 0, V, dtype=jnp.int32)

    out = jax.block_until_ready(sentiment_forward(x, emb, w, b))

    # Faithful pure-JAX reference of the original module's forward pass.
    ref = jnp.round(jax.nn.sigmoid(jnp.mean(emb[x], axis=1) @ w + b) * 1e4) / 1e4
    assert out.shape == (B, 1)
    # Folding the Linear weight into the table changes fp32 summation order; a
    # value sitting exactly on a 4th-decimal boundary may flip by one ulp of
    # the rounding grid, so allow 1.5e-4 of slack.
    assert jnp.max(jnp.abs(out - ref)) <= 1.5e-4, (out, ref)

    print("KERNEL_OK")
</pallas_src>

<mosaic_0001>
module attributes {stable_mosaic.version = 11 : i64} {
  func.func @sentiment_kernel(%arg0: i32, %arg1: memref<8x8xi32, #tpu.memory_space<vmem>>, %arg2: memref<1x128xf32, #tpu.memory_space<vmem>>, %arg3: memref<1x1xf32, #tpu.memory_space<smem>>, %arg4: memref<8x1xf32, #tpu.memory_space<vmem>>) attributes {dimension_semantics = [#tpu.dimension_semantics<parallel>], iteration_bounds = array<i64: 8>, scalar_prefetch = 0 : i64, scratch_operands = 0 : i64, tpu.core_type = #tpu.core_type<tc>, window_params = [{transform_indices = @transform_0, window_bounds = array<i64: 8, 8>}, {pipeline_mode = #tpu.pipeline_mode<synchronous>, transform_indices = @transform_1, window_bounds = array<i64: 1, 128>}, {transform_indices = @transform_2, window_bounds = array<i64: 1, 1>}, {transform_indices = @transform_3, window_bounds = array<i64: 8, 1>}]} {
    %c0 = arith.constant 0 : index
    %c0_0 = arith.constant 0 : index
    %0 = vector.load %arg1[%c0, %c0_0] : memref<8x8xi32, #tpu.memory_space<vmem>>, vector<8x8xi32>
    %1 = tpu.iota {dimensions = array<i32: 1>} : vector<8x128xi32>
    %c0_i32 = arith.constant 0 : i32
    %2 = vector.broadcast %c0_i32 : i32 to vector<8x128xi32>
    %3 = vector.extract_strided_slice %0 {offsets = [0, 0], sizes = [8, 1], strides = [1, 1]} : vector<8x8xi32> to vector<8x1xi32>
    %4 = vector.broadcast %3 : vector<8x1xi32> to vector<8x128xi32>
    %5 = arith.cmpi eq, %4, %1 : vector<8x128xi32>
    %6 = arith.extui %5 : vector<8x128xi1> to vector<8x128xi32>
    %7 = arith.addi %2, %6 : vector<8x128xi32>
    %8 = vector.extract_strided_slice %0 {offsets = [0, 1], sizes = [8, 1], strides = [1, 1]} : vector<8x8xi32> to vector<8x1xi32>
    %9 = vector.broadcast %8 : vector<8x1xi32> to vector<8x128xi32>
    %10 = arith.cmpi eq, %9, %1 : vector<8x128xi32>
    %11 = arith.extui %10 : vector<8x128xi1> to vector<8x128xi32>
    %12 = arith.addi %7, %11 : vector<8x128xi32>
    %13 = vector.extract_strided_slice %0 {offsets = [0, 2], sizes = [8, 1], strides = [1, 1]} : vector<8x8xi32> to vector<8x1xi32>
    %14 = vector.broadcast %13 : vector<8x1xi32> to vector<8x128xi32>
    %15 = arith.cmpi eq, %14, %1 : vector<8x128xi32>
    %16 = arith.extui %15 : vector<8x128xi1> to vector<8x128xi32>
    %17 = arith.addi %12, %16 : vector<8x128xi32>
    %18 = vector.extract_strided_slice %0 {offsets = [0, 3], sizes = [8, 1], strides = [1, 1]} : vector<8x8xi32> to vector<8x1xi32>
    %19 = vector.broadcast %18 : vector<8x1xi32> to vector<8x128xi32>
    %20 = arith.cmpi eq, %19, %1 : vector<8x128xi32>
    %21 = arith.extui %20 : vector<8x128xi1> to vector<8x128xi32>
    %22 = arith.addi %17, %21 : vector<8x128xi32>
    %23 = vector.extract_strided_slice %0 {offsets = [0, 4], sizes = [8, 1], strides = [1, 1]} : vector<8x8xi32> to vector<8x1xi32>
    %24 = vector.broadcast %23 : vector<8x1xi32> to vector<8x128xi32>
    %25 = arith.cmpi eq, %24, %1 : vector<8x128xi32>
    %26 = arith.extui %25 : vector<8x128xi1> to vector<8x128xi32>
    %27 = arith.addi %22, %26 : vector<8x128xi32>
    %28 = vector.extract_strided_slice %0 {offsets = [0, 5], sizes = [8, 1], strides = [1, 1]} : vector<8x8xi32> to vector<8x1xi32>
    %29 = vector.broadcast %28 : vector<8x1xi32> to vector<8x128xi32>
    %30 = arith.cmpi eq, %29, %1 : vector<8x128xi32>
    %31 = arith.extui %30 : vector<8x128xi1> to vector<8x128xi32>
    %32 = arith.addi %27, %31 : vector<8x128xi32>
    %33 = vector.extract_strided_slice %0 {offsets = [0, 6], sizes = [8, 1], strides = [1, 1]} : vector<8x8xi32> to vector<8x1xi32>
    %34 = vector.broadcast %33 : vector<8x1xi32> to vector<8x128xi32>
    %35 = arith.cmpi eq, %34, %1 : vector<8x128xi32>
    %36 = arith.extui %35 : vector<8x128xi1> to vector<8x128xi32>
    %37 = arith.addi %32, %36 : vector<8x128xi32>
    %38 = vector.extract_strided_slice %0 {offsets = [0, 7], sizes = [8, 1], strides = [1, 1]} : vector<8x8xi32> to vector<8x1xi32>
    %39 = vector.broadcast %38 : vector<8x1xi32> to vector<8x128xi32>
    %40 = arith.cmpi eq, %39, %1 : vector<8x128xi32>
    %41 = arith.extui %40 : vector<8x128xi1> to vector<8x128xi32>
    %42 = arith.addi %37, %41 : vector<8x128xi32>
    %43 = arith.sitofp %42 : vector<8x128xi32> to vector<8x128xf32>
    %c0_1 = arith.constant 0 : index
    %c0_2 = arith.constant 0 : index
    %44 = vector.load %arg2[%c0_1, %c0_2] : memref<1x128xf32, #tpu.memory_space<vmem>>, vector<1x128xf32>
    %45 = vector.broadcast %44 : vector<1x128xf32> to vector<8x128xf32>
    %46 = arith.mulf %43, %45 : vector<8x128xf32>
    %cst = arith.constant dense<0.000000e+00> : vector<8xf32>
    %47 = vector.multi_reduction <add>, %46, %cst [1] : vector<8x128xf32> to vector<8xf32>
    %48 = vector.shape_cast %47 : vector<8xf32> to vector<8x1xf32>
    %c0_3 = arith.constant 0 : index
    %c0_4 = arith.constant 0 : index
    %49 = memref.load %arg3[%c0_3, %c0_4] : memref<1x1xf32, #tpu.memory_space<smem>>
    %50 = vector.broadcast %49 : f32 to vector<8x1xf32>
    %51 = arith.addf %48, %50 : vector<8x1xf32>
    %52 = arith.negf %51 : vector<8x1xf32>
    %53 = math.exp %52 : vector<8x1xf32>
    %cst_5 = arith.constant 1.000000e+00 : f32
    %54 = vector.broadcast %cst_5 : f32 to vector<8x1xf32>
    %55 = arith.addf %54, %53 : vector<8x1xf32>
    %56 = arith.divf %54, %55 : vector<8x1xf32>
    %cst_6 = arith.constant 1.000000e+04 : f32
    %57 = vector.broadcast %cst_6 : f32 to vector<8x1xf32>
    %58 = arith.mulf %56, %57 : vector<8x1xf32>
    %59 = math.roundeven %58 : vector<8x1xf32>
    %cst_7 = arith.constant 1.000000e+04 : f32
    %60 = vector.broadcast %cst_7 : f32 to vector<8x1xf32>
    %61 = arith.divf %59, %60 : vector<8x1xf32>
    %c0_8 = arith.constant 0 : index
    %c0_9 = arith.constant 0 : index
    %62 = vector.load %arg4[%c0_8, %c0_9] : memref<8x1xf32, #tpu.memory_space<vmem>>, vector<8x1xf32>
    tpu.vector_store %arg4[%c0_8, %c0_9], %61 {strides = array<i32>} : memref<8x1xf32, #tpu.memory_space<vmem>>, vector<8x1xf32>,
    return
  }
  func.func @transform_0(%arg0: i32) -> (i32, i32) {
    %c0_i32 = arith.constant 0 : i32
    %c0_i32_0 = arith.constant 0 : i32
    return %arg0, %c0_i32 : i32, i32
  }
  func.func @transform_1(%arg0: i32) -> (i32, i32) {
    %c0_i32 = arith.constant 0 : i32
    %c0_i32_0 = arith.constant 0 : i32
    %c0_i32_1 = arith.constant 0 : i32
    return %c0_i32, %c0_i32_0 : i32, i32
  }
  func.func @transform_2(%arg0: i32) -> (i32, i32) {
    %c0_i32 = arith.constant 0 : i32
    %c0_i32_0 = arith.constant 0 : i32
    %c0_i32_1 = arith.constant 0 : i32
    return %c0_i32, %c0_i32_0 : i32, i32
  }
  func.func @transform_3(%arg0: i32) -> (i32, i32) {
    %c0_i32 = arith.constant 0 : i32
    %c0_i32_0 = arith.constant 0 : i32
    return %arg0, %c0_i32 : i32, i32
  }
}

</mosaic_0001>

<llo_original>
// kernel: tpu_custom_call.1
$region0: #{tpu_custom_call.1}
  #allocation0 [shape = 'u32[]', space=smem, size = 0x4, offset = 0x4, fixed_abs, tag = 'smem constant byte address 0x4 - core index']
  #allocation1 [shape = 'u32[72,128]{1,0:T(1,128)}', space=vmem, size = 0x9000, scoped, tag = 'internal scratch']
  #allocation2 [shape = 'f32[1,1]{1,0:T(1,128)S(6)}', space=smem, size = 0x200, scoped, tag = 'scoped memory for tpu_custom_call.1']
  %s0 = inlined_call_operand.vmem [shape: s32[64,8], index: 0, kind: input, shape index: {}]
  %s1 = inlined_call_operand.vmem [shape: f32[1,128], index: 1, kind: input, shape index: {}]
  %s2 = inlined_call_operand.<no memory space> [shape: f32[1,1], index: 2, kind: input, shape index: {}]
  %s3 = inlined_call_operand.vmem [shape: f32[64,1], index: 3, kind: output, shape index: {}]
  %s4 = sld [smem:[#allocation0]]
  $region45: #{tpu_custom_call.1} parent=0
    _
  %s6 = ssub.s32 1, %s4
  %s7 = scalar_select 0, %s6, %s4
  %8 = sst [smem:[#allocation2]] %s2
  loop: start=0, step=1, limit=10
  $region2: #{tpu_custom_call.1} parent=0 // loop_pre_header
    _
  $region3: #{tpu_custom_call.1} parent=0 // loop_header
    %s10 = sphi 0, %s14
    %p11 = scmp.ge.s32.totalorder %s10, 10
    %s20 = sphi 0, %s22
    %s23 = sphi 0, %s20
    %s24 = sphi 0, %s23
    %s40 = sphi 0, %s24
    %s44 = sphi 0, %s44
    %s46 = sphi 0, %s44
    %s47 = sphi 0, %s46
    %s61 = sphi 0, %s47
    %s65 = sphi 0, %s65
    %s67 = sphi 0, %s65
    %s68 = sphi 0, %s67
    %s82 = sphi 0, %s68
    %s88 = sphi 0, %s90
    %s91 = sphi 0, %s88
    %s92 = sphi 0, %s91
    %s108 = sphi 0, %s92
  $region4: #{tpu_custom_call.1} parent=0 // loop_header_branch
    %13 = sbr.rel (%p11) target = $region8
  $region5: #{tpu_custom_call.1} parent=0 // loop_body
    %s15 = ssub.s32 %s10, 1
    %s16 = ssub.s32 %s10, 2
    %s17 = sadd.s32 %s10, 1
    %s18 = ssub.s32 %s10, %s17
    %p19 = scmp.eq.s32.totalorder %s18, 0
    %s21 = sadd.s32 %s20, 1
    %s22 = scalar_select %p19, %s20, %s21
    %p25 = pneg %p19
    %p26 = scmp.eq.s32.totalorder %s10, 7
    %p27 = por %p25, %p26
    %p28 = scmp.ne.s32.totalorder %s20, %s23
    %p29 = scmp.eq.s32.totalorder %s10, 0
    %p30 = por %p28, %p29
    %p31 = scmp.ne.s32.totalorder %s20, %s23
    %p32 = scmp.eq.s32.totalorder %s15, 7
    %p33 = por %p31, %p32
    %p34 = scmp.ne.s32.totalorder %s23, %s24
    %p35 = scmp.eq.s32.totalorder %s15, 0
    %p36 = por %p34, %p35
    %p37 = scmp.ne.s32.totalorder %s23, %s24
    %p38 = scmp.eq.s32.totalorder %s16, 7
    %p39 = por %p37, %p38
    %p41 = scmp.ne.s32.totalorder %s24, %s40
    %p42 = scmp.eq.s32.totalorder %s16, 0
    %p43 = por %p41, %p42
    %s45 = sadd.s32 %s44, 1
    %p48 = scmp.eq.s32.totalorder %s10, 7
    %p49 = scmp.ne.s32.totalorder %s44, %s46
    %p50 = scmp.eq.s32.totalorder %s10, 0
    %p51 = por %p49, %p50
    %p52 = scmp.ne.s32.totalorder %s44, %s46
    %p53 = scmp.eq.s32.totalorder %s15, 7
    %p54 = por %p52, %p53
    %p55 = scmp.ne.s32.totalorder %s46, %s47
    %p56 = scmp.eq.s32.totalorder %s15, 0
    %p57 = por %p55, %p56
    %p58 = scmp.ne.s32.totalorder %s46, %s47
    %p59 = scmp.eq.s32.totalorder %s16, 7
    %p60 = por %p58, %p59
    %p62 = scmp.ne.s32.totalorder %s47, %s61
    %p63 = scmp.eq.s32.totalorder %s16, 0
    %p64 = por %p62, %p63
    %s66 = sadd.s32 %s65, 1
    %p69 = scmp.eq.s32.totalorder %s10, 7
    %p70 = scmp.ne.s32.totalorder %s65, %s67
    %p71 = scmp.eq.s32.totalorder %s10, 0
    %p72 = por %p70, %p71
    %p73 = scmp.ne.s32.totalorder %s65, %s67
    %p74 = scmp.eq.s32.totalorder %s15, 7
    %p75 = por %p73, %p74
    %p76 = scmp.ne.s32.totalorder %s67, %s68
    %p77 = scmp.eq.s32.totalorder %s15, 0
    %p78 = por %p76, %p77
    %p79 = scmp.ne.s32.totalorder %s67, %s68
    %p80 = scmp.eq.s32.totalorder %s16, 7
    %p81 = por %p79, %p80
    %p83 = scmp.ne.s32.totalorder %s68, %s82
    %p84 = scmp.eq.s32.totalorder %s16, 0
    %p85 = por %p83, %p84
    %s86 = ssub.s32 %s10, %s17
    %p87 = scmp.eq.s32.totalorder %s86, 0
    %s89 = sadd.s32 %s88, 1
    %s90 = scalar_select %p87, %s88, %s89
    %p93 = pneg %p87
    %p94 = scmp.eq.s32.totalorder %s10, 7
    %p95 = por %p93, %p94
    %p96 = scmp.ne.s32.totalorder %s88, %s91
    %p97 = scmp.eq.s32.totalorder %s10, 0
    %p98 = por %p96, %p97
    %p99 = scmp.ne.s32.totalorder %s88, %s91
    %p100 = scmp.eq.s32.totalorder %s15, 7
    %p101 = por %p99, %p100
    %p102 = scmp.ne.s32.totalorder %s91, %s92
    %p103 = scmp.eq.s32.totalorder %s15, 0
    %p104 = por %p102, %p103
    %p105 = scmp.ne.s32.totalorder %s91, %s92
    %p106 = scmp.eq.s32.totalorder %s16, 7
    %p107 = por %p105, %p106
    %p109 = scmp.ne.s32.totalorder %s92, %s108
    %p110 = scmp.eq.s32.totalorder %s16, 0
    %p111 = por %p109, %p110
    %p112 = scmp.le.s32.totalorder 1, %s10
    %p113 = scmp.lt.s32.totalorder %s10, 9
    %p114 = pnand %p112, %p113
    %p115 = pneg %p114
    // Predicated region
    $region9: #{tpu_custom_call.1} parent=5 // pred_check
      _
    $region10: #{tpu_custom_call.1} parent=5 // pred_check_branch
      %117 = sbr.rel (%p114) target = $region12
    $region11: #{tpu_custom_call.1} parent=5 // pred_region
      %s118 = ssub.s32 %s10, 1
      // Predicated region
      $region13: #{tpu_custom_call.1} parent=11 // pred_check
        %p119 = pneg %p57
      $region14: #{tpu_custom_call.1} parent=11 // pred_check_branch
        %121 = sbr.rel (%p119) target = $region16
      $region15: #{tpu_custom_call.1} parent=11 // pred_region
        _
      $region16: #{tpu_custom_call.1} parent=11 // pred_fallthru
        _
      // Predicated region
      $region17: #{tpu_custom_call.1} parent=11 // pred_check
        %p122 = pneg %p78
      $region18: #{tpu_custom_call.1} parent=11 // pred_check_branch
        %124 = sbr.rel (%p122) target = $region20
      $region19: #{tpu_custom_call.1} parent=11 // pred_region
        _
      $region20: #{tpu_custom_call.1} parent=11 // pred_fallthru
        _
    $region12: #{tpu_custom_call.1} parent=5 // pred_fallthru
      _
    %p125 = scmp.lt.s32.totalorder %s10, 8
    // Predicated region
    $region21: #{tpu_custom_call.1} parent=5 // pred_check
      %p126 = pneg %p125
    $region22: #{tpu_custom_call.1} parent=5 // pred_check_branch
      %128 = sbr.rel (%p126) target = $region24
    $region23: #{tpu_custom_call.1} parent=5 // pred_region
      // Predicated region
      $region25: #{tpu_custom_call.1} parent=23 // pred_check
        %p129 = pneg %p30
      $region26: #{tpu_custom_call.1} parent=23 // pred_check_branch
        %131 = sbr.rel (%p129) target = $region28
      $region27: #{tpu_custom_call.1} parent=23 // pred_region
        %p132 = scmp.lt.s32.totalorder %s10, 7
        %s133 = scalar_select %p132, %s10, 7
        %s134 = smul.addr %s133, 8
        %s135 = scalar_lea.vmem %s0, %s134
      $region28: #{tpu_custom_call.1} parent=23 // pred_fallthru
        _
    $region24: #{tpu_custom_call.1} parent=5 // pred_fallthru
      _
    %p136 = scmp.le.s32.totalorder 1, %s10
    %p137 = scmp.lt.s32.totalorder %s10, 9
    %p138 = pnand %p136, %p137
    %p139 = pneg %p138
    // Predicated region
    $region29: #{tpu_custom_call.1} parent=5 // pred_check
      _
    $region30: #{tpu_custom_call.1} parent=5 // pred_check_branch
      %141 = sbr.rel (%p138) target = $region32
    $region31: #{tpu_custom_call.1} parent=5 // pred_region
      %s142 = ssub.s32 %s10, 1
      %p143 = scmp.lt.s32.totalorder %s15, 7
      %s144 = scalar_select %p143, %s15, 7
      %s145 = smul.addr %s144, 8
      %s146 = scalar_lea.vmem %s0, %s145
      %p147 = pneg %p36
      %p148 = pneg %p33
      %p149 = pneg %p57
      %p150 = pneg %p54
      %p151 = pneg %p78
      %p152 = pneg %p75
      %p153 = pneg %p104
      %p154 = pneg %p101
      %p155 = scmp.lt.s32.totalorder %s15, 7
      %s156 = scalar_select %p155, %s15, 7
      %s157 = smul.addr %s156, 8
      %s158 = scalar_lea.vmem %s3, %s157
      %p159 = scmp.lt.s32.totalorder %s15, 7
      %s160 = scalar_select %p159, %s15, 7
      %s161 = smul.addr %s160, 8
      %s162 = scalar_lea.vmem %s0, %s161
      %p163 = scmp.lt.s32.totalorder %s15, 7
      %s164 = scalar_select %p163, %s15, 7
      %s165 = smul.addr %s164, 8
      %s166 = scalar_lea.vmem %s3, %s165
      %v167 = vld [vmem:[%s162] sm:$0xff]
      %v168 = vlaneseq
      %v169 = vand.u32 %v168, 127
      %170 = vset.pattern.permute.xlu0 0
      %171 = vperm.xlu0 %170, %v167
      %v172 = vpop.permute.xlu0 %171
      %vm173 = vcmp.eq.s32.totalorder %v172, %v169
      %v174 = vsel %vm173, 1, 0
      %175 = vset.pattern.permute.xlu0 1
      %176 = vperm.xlu0 %175, %v167
      %v177 = vpop.permute.xlu0 %176
      %vm178 = vcmp.eq.s32.totalorder %v177, %v169
      %v179 = vsel %vm178, 1, 0
      %v180 = vadd.s32 %v174, %v179
      %181 = vset.pattern.permute.xlu0 2
      %182 = vperm.xlu0 %181, %v167
      %v183 = vpop.permute.xlu0 %182
      %vm184 = vcmp.eq.s32.totalorder %v183, %v169
      %v185 = vsel %vm184, 1, 0
      %v186 = vadd.s32 %v180, %v185
      %187 = vset.pattern.permute.xlu0 3
      %188 = vperm.xlu0 %187, %v167
      %v189 = vpop.permute.xlu0 %188
      %vm190 = vcmp.eq.s32.totalorder %v189, %v169
      %v191 = vsel %vm190, 1, 0
      %v192 = vadd.s32 %v186, %v191
      %193 = vset.pattern.permute.xlu0 4
      %194 = vperm.xlu0 %193, %v167
      %v195 = vpop.permute.xlu0 %194
      %vm196 = vcmp.eq.s32.totalorder %v195, %v169
      %v197 = vsel %vm196, 1, 0
      %v198 = vadd.s32 %v192, %v197
      %199 = vset.pattern.permute.xlu0 5
      %200 = vperm.xlu0 %199, %v167
      %v201 = vpop.permute.xlu0 %200
      %vm202 = vcmp.eq.s32.totalorder %v201, %v169
      %v203 = vsel %vm202, 1, 0
      %v204 = vadd.s32 %v198, %v203
      %205 = vset.pattern.permute.xlu0 6
      %206 = vperm.xlu0 %205, %v167
      %v207 = vpop.permute.xlu0 %206
      %vm208 = vcmp.eq.s32.totalorder %v207, %v169
      %v209 = vsel %vm208, 1, 0
      %v210 = vadd.s32 %v204, %v209
      %211 = vset.pattern.permute.xlu0 7
      %212 = vperm.xlu0 %211, %v167
      %v213 = vpop.permute.xlu0 %212
      %vm214 = vcmp.eq.s32.totalorder %v213, %v169
      %v215 = vsel %vm214, 1, 0
      %v216 = vadd.s32 %v210, %v215
      %v217 = vcvt.s32.f32 %v216
      %v218 = vld [vmem:[%s1] sm:$0x1]
      %v220 = vperm.slane %v218, 0
      %v222 = vmul.f32 %v217, %v220
      %223 = vadd.xlane.f32.xlu0 %v222
      %v224 = vpop.xlane.xlu0 %223
      %s225 = sld [smem:[#allocation2]]
      %v226 = vstv %s225
      %v227 = vadd.f32 %v224, %v226
      %v228 = vxor.u32 %v227, 2147483648
      %v229 = vmul.f32 %v228, 1.442695
      %v230 = vpow.pop %v229
      %v231 = vadd.f32 %v230, 1.0
      %v232 = vrcp.pop %v231
      %v233 = vmul.f32 %v231, %v232
      %v234 = vsub.f32 1.0, %v233
      %v235 = vmul.f32 %v232, %v234
      %v236 = vadd.f32 %v232, %v235
      %vm237 = vweird.f32 %v231
      %vm238 = vweird.f32 %v232
      %vm239 = vmor %vm237, %vm238
      %v240 = vsel %vm239, %v232, %v236
      %v241 = vand.u32 2147483647, %v231
      %vm242 = vcmp.eq.f32.partialorder %v241, 8.507059e+37
      %v243 = vand.u32 %v231, 2147483648
      %v244 = vor.u32 1.1754944e-38, %v243
      %v245 = vsel %vm242, %v244, %v240
      %v246 = vmul.f32 1.0, %v245
      %v247 = vmul.f32 %v246, 10000.0
      %v248 = vround.ne.pseudo %v247
      %v249 = vrcp.pop 10000.0
      %v250 = vmul.f32 10000.0, %v249
      %v251 = vsub.f32 1.0, %v250
      %v252 = vmul.f32 %v249, %v251
      %v253 = vadd.f32 %v249, %v252
      %vm254 = vweird.f32 %v249
      %v255 = vsel %vm254, %v249, %v253
      %v256 = vmul.f32 %v248, %v255
      %vm257 = vcmask 7168
      %258 = vst.msk [vmem:[%s166] sm:$0xff] %vm257, %v256
      %p259 = scmp.lt.s32.totalorder %s15, 7
      %s260 = scalar_select %p259, %s15, 7
      %s261 = smul.addr %s260, 8
      %s262 = scalar_lea.vmem %s3, %s261
      // Predicated region
      $region33: #{tpu_custom_call.1} parent=31 // pred_check
        %p263 = pneg %p101
      $region34: #{tpu_custom_call.1} parent=31 // pred_check_branch
        %265 = sbr.rel (%p263) target = $region36
      $region35: #{tpu_custom_call.1} parent=31 // pred_region
        _
      $region36: #{tpu_custom_call.1} parent=31 // pred_fallthru
        _
    $region32: #{tpu_custom_call.1} parent=5 // pred_fallthru
      _
    %p266 = scmp.le.s32.totalorder 2, %s10
    // Predicated region
    $region37: #{tpu_custom_call.1} parent=5 // pred_check
      %p267 = pneg %p266
    $region38: #{tpu_custom_call.1} parent=5 // pred_check_branch
      %269 = sbr.rel (%p267) target = $region40
    $region39: #{tpu_custom_call.1} parent=5 // pred_region
      %s270 = ssub.s32 %s10, 2
      // Predicated region
      $region41: #{tpu_custom_call.1} parent=39 // pred_check
        %p271 = pneg %p107
      $region42: #{tpu_custom_call.1} parent=39 // pred_check_branch
        %273 = sbr.rel (%p271) target = $region44
      $region43: #{tpu_custom_call.1} parent=39 // pred_region
        %p274 = scmp.lt.s32.totalorder %s16, 7
        %s275 = scalar_select %p274, %s16, 7
        %s276 = smul.addr %s275, 8
        %s277 = scalar_lea.vmem %s3, %s276
      $region44: #{tpu_custom_call.1} parent=39 // pred_fallthru
        _
    $region40: #{tpu_custom_call.1} parent=5 // pred_fallthru
      _
  $region6: #{tpu_custom_call.1} parent=0 // loop_footer
    %s14 = sadd.s32 1, %s10
  $region7: #{tpu_custom_call.1} parent=0 // loop_footer_branch
    %9 = sbr.rel target = $region3
  $region8: #{tpu_custom_call.1} parent=0 // loop_exit
    _

</llo_original>
